<compile_context>
chip_gen: v5e
topology: v5e:2x2
jax: 0.10.0
libtpu: 0.0.40
codegen_flags: <defaults>
</compile_context>

<pallas_src>
import jax
import jax.numpy as jnp
from jax.experimental import pallas as pl
from jax.experimental.pallas import tpu as pltpu


def _round_up(x, m):
    return ((x + m - 1) // m) * m


def mlp3_kernel(x_ref,
                w1_ref, b1_ref,
                w2_ref, b2_ref,
                w3_ref, b3_ref,
                o_ref):
    """Fused fc1+ReLU -> fc2+ReLU -> fc3.

    x arrives in f32 and is cast to the matmul dtype (bf16) in-kernel; all
    matmuls accumulate in f32; bias-add and ReLU stay in f32; the final store
    casts to the (bf16) lane-padded output slab."""
    mm_dtype = w1_ref.dtype

    x = x_ref[...].astype(mm_dtype)                                 # (TB, Kp) bf16
    h1 = jnp.dot(x, w1_ref[...],
                 preferred_element_type=jnp.float32) + b1_ref[...]  # (TB, 512) f32
    h1 = jnp.maximum(h1, 0.0)

    h2 = jnp.dot(h1.astype(mm_dtype), w2_ref[...],
                 preferred_element_type=jnp.float32) + b2_ref[...]  # (TB, 128) f32
    h2 = jnp.maximum(h2, 0.0)

    h3 = jnp.dot(h2.astype(mm_dtype), w3_ref[...],
                 preferred_element_type=jnp.float32) + b3_ref[...]  # (TB, Np) f32

    o_ref[...] = h3.astype(o_ref.dtype)


def init_params(key, flattened, n_classes):
    """nn.Linear-style U(-1/sqrt(fan_in), 1/sqrt(fan_in)) init.
    Weights stored as (in_features, out_features): the kernel does x @ W + b,
    which equals torch's x @ W_torch.T + b."""
    dims = [flattened, 512, 128, n_classes]
    params = []
    for i in range(3):
        fan_in, fan_out = dims[i], dims[i + 1]
        key, kw, kb = jax.random.split(key, 3)
        bound = 1.0 / (fan_in ** 0.5)
        w = jax.random.uniform(kw, (fan_in, fan_out), jnp.float32, -bound, bound)
        b = jax.random.uniform(kb, (1, fan_out), jnp.float32, -bound, bound)
        params.append((w, b))
    return params


def prepare_params(params, matmul_dtype=jnp.bfloat16):
    """One-time prep outside the kernel:
      * zero-pad fc1's input dim (K) to a multiple of 128 lanes,
      * zero-pad fc3's output dim to a multiple of 128 lanes,
      * cast weights to the matmul dtype (biases stay f32 for the f32 add)."""
    (w1, b1), (w2, b2), (w3, b3) = params
    flattened, n_classes = w1.shape[0], w3.shape[1]

    k_pad = _round_up(flattened, 128) - flattened
    w1p = jnp.pad(w1, ((0, k_pad), (0, 0)))

    n_pad = _round_up(n_classes, 128) - n_classes
    w3p = jnp.pad(w3, ((0, 0), (0, n_pad)))
    b3p = jnp.pad(b3, ((0, 0), (0, n_pad)))

    return ((w1p.astype(matmul_dtype), b1.astype(jnp.float32)),
            (w2.astype(matmul_dtype), b2.astype(jnp.float32)),
            (w3p.astype(matmul_dtype), b3p.astype(jnp.float32)))


def model3_forward(x, prepared_params, n_classes, max_batch_tile=1024):
    """x: [B, C, H, W] with C*H*W == flattened, or already [B, flattened].
    Returns f32 logits of shape [B, n_classes]."""
    (w1, b1), (w2, b2), (w3, b3) = prepared_params
    kp = w1.shape[0]                       # 128-padded flattened
    h1n, h2n, out_pad = w1.shape[1], w2.shape[1], w3.shape[1]

    # Flatten (== torch x.view(-1, flattened)); keep f32 — the bf16 cast
    # happens inside the kernel. Zero-pad K columns to match the padded w1.
    x2d = x.reshape(x.shape[0], -1).astype(jnp.float32)
    B, k_in = x2d.shape
    assert k_in <= kp, f"input features {k_in} exceed fc1 in-features {kp}"
    if k_in < kp:
        x2d = jnp.pad(x2d, ((0, 0), (0, kp - k_in)))

    # Grid: >= 2 steps so ("parallel",) spans both v7x TensorCores; tb is a
    # multiple of 16, derived from the step count so batch padding stays
    # bounded by ~steps*16 rows instead of up to a whole tile.
    steps = max(2, pl.cdiv(B, max_batch_tile))
    tb = _round_up(pl.cdiv(B, steps), 16)
    padded_B = steps * tb
    if padded_B != B:
        x2d = jnp.pad(x2d, ((0, padded_B - B), (0, 0)))

    # Advisory cost estimate so XLA schedules neighbouring ops sensibly.
    flops = 2 * padded_B * (kp * h1n + h1n * h2n + h2n * out_pad)
    bytes_accessed = (padded_B * kp * 4
                      + (w1.size + w2.size + w3.size) * w1.dtype.itemsize
                      + (b1.size + b2.size + b3.size) * 4
                      + padded_B * out_pad * 2)
    cost = pl.CostEstimate(flops=flops, transcendentals=0,
                           bytes_accessed=bytes_accessed)

    # Rough resident-VMEM footprint (double-buffered weights + x/out tiles
    # + f32 intermediates). Only override the scoped-VMEM limit if it would
    # exceed the conservative 32 MiB default (v7x escape hatch).
    # TODO(synk): K-tile fc1 (reduction grid axis + f32 accumulator scratch)
    # if `flattened` ever grows past what fits weight-resident on v7x.
    weight_bytes = 2 * ((w1.size + w2.size + w3.size) * w1.dtype.itemsize
                        + (b1.size + b2.size + b3.size) * 4)
    io_bytes = 2 * (tb * kp * 4 + tb * out_pad * 2)
    interm_bytes = 2 * tb * (h1n + h2n) * 4
    vmem_needed = weight_bytes + io_bytes + interm_bytes
    cp_kwargs = dict(dimension_semantics=("parallel",))
    if vmem_needed > (32 << 20):
        cp_kwargs["vmem_limit_bytes"] = int(min(vmem_needed + (8 << 20), 128 << 20))

    out = pl.pallas_call(
        mlp3_kernel,
        out_shape=jax.ShapeDtypeStruct((padded_B, out_pad), jnp.bfloat16),
        grid=(steps,),
        in_specs=[
            pl.BlockSpec((tb, kp), lambda i: (i, 0)),     # x: tiled over batch (f32)
            pl.BlockSpec((kp, h1n), lambda i: (0, 0)),    # weights/biases stay
            pl.BlockSpec((1, h1n), lambda i: (0, 0)),     # resident in VMEM
            pl.BlockSpec((h1n, h2n), lambda i: (0, 0)),
            pl.BlockSpec((1, h2n), lambda i: (0, 0)),
            pl.BlockSpec((h2n, out_pad), lambda i: (0, 0)),
            pl.BlockSpec((1, out_pad), lambda i: (0, 0)),
        ],
        out_specs=pl.BlockSpec((tb, out_pad), lambda i: (i, 0)),
        compiler_params=pltpu.CompilerParams(**cp_kwargs),
        cost_estimate=cost,
    )(x2d, w1, b1, w2, b2, w3, b3)

    # Lane-dense bf16 slab -> slice the real classes, upcast to f32 logits.
    return out[:B, :n_classes].astype(jnp.float32)


if __name__ == "__main__":
    img_h, img_w, n_classes = 16, 16, 10
    batch = 2
    flattened = img_h * img_w

    key = jax.random.PRNGKey(0)
    key, kx = jax.random.split(key)
    # NCHW input like PyTorch (C=1); wrapper flattens it to [B, H*W].
    x = jax.random.normal(kx, (batch, 1, img_h, img_w), jnp.float32)

    params = init_params(key, flattened, n_classes)
    prepared = prepare_params(params, matmul_dtype=jnp.bfloat16)

    out = model3_forward(x, prepared, n_classes)
    out = jax.block_until_ready(out)
    assert out.shape == (batch, n_classes)
    assert out.dtype == jnp.float32

    # Reference 1: same math as the kernel (bf16 operands, f32 accumulate,
    # final bf16 store) — tolerance at the bf16-rounding level.
    (w1, b1), (w2, b2), (w3, b3) = params
    mm = jnp.bfloat16
    h = x.reshape(-1, flattened).astype(mm)
    h = jnp.maximum(jnp.dot(h, w1.astype(mm),
                            preferred_element_type=jnp.float32) + b1, 0.0)
    h = jnp.maximum(jnp.dot(h.astype(mm), w2.astype(mm),
                            preferred_element_type=jnp.float32) + b2, 0.0)
    ref_bf16 = jnp.dot(h.astype(mm), w3.astype(mm),
                       preferred_element_type=jnp.float32) + b3
    ref_bf16 = ref_bf16.astype(jnp.bfloat16).astype(jnp.float32)
    assert jnp.allclose(out, ref_bf16, atol=1e-2, rtol=1e-2)

    # Reference 2: pure f32 PyTorch-equivalent math (loose bf16-level tol).
    h = x.reshape(-1, flattened)
    h = jnp.maximum(h @ w1 + b1, 0.0)
    h = jnp.maximum(h @ w2 + b2, 0.0)
    ref_f32 = h @ w3 + b3
    assert jnp.allclose(out, ref_f32, atol=5e-2, rtol=5e-2)

    print("KERNEL_OK")
</pallas_src>

<mosaic_0001>
module attributes {stable_mosaic.version = 11 : i64} {
  func.func @mlp3_kernel(%arg0: i32, %arg1: memref<16x256xf32, #tpu.memory_space<vmem>>, %arg2: memref<256x512xbf16, #tpu.memory_space<vmem>>, %arg3: memref<1x512xf32, #tpu.memory_space<vmem>>, %arg4: memref<512x128xbf16, #tpu.memory_space<vmem>>, %arg5: memref<1x128xf32, #tpu.memory_space<vmem>>, %arg6: memref<128x128xbf16, #tpu.memory_space<vmem>>, %arg7: memref<1x128xf32, #tpu.memory_space<vmem>>, %arg8: memref<16x128xbf16, #tpu.memory_space<vmem>>) attributes {dimension_semantics = [#tpu.dimension_semantics<parallel>], iteration_bounds = array<i64: 2>, scalar_prefetch = 0 : i64, scratch_operands = 0 : i64, tpu.core_type = #tpu.core_type<tc>, window_params = [{transform_indices = @transform_0, window_bounds = array<i64: 16, 256>}, {pipeline_mode = #tpu.pipeline_mode<synchronous>, transform_indices = @transform_1, window_bounds = array<i64: 256, 512>}, {pipeline_mode = #tpu.pipeline_mode<synchronous>, transform_indices = @transform_2, window_bounds = array<i64: 1, 512>}, {pipeline_mode = #tpu.pipeline_mode<synchronous>, transform_indices = @transform_3, window_bounds = array<i64: 512, 128>}, {pipeline_mode = #tpu.pipeline_mode<synchronous>, transform_indices = @transform_4, window_bounds = array<i64: 1, 128>}, {pipeline_mode = #tpu.pipeline_mode<synchronous>, transform_indices = @transform_5, window_bounds = array<i64: 128, 128>}, {pipeline_mode = #tpu.pipeline_mode<synchronous>, transform_indices = @transform_6, window_bounds = array<i64: 1, 128>}, {transform_indices = @transform_7, window_bounds = array<i64: 16, 128>}]} {
    %c0 = arith.constant 0 : index
    %c0_0 = arith.constant 0 : index
    %0 = vector.load %arg1[%c0, %c0_0] : memref<16x256xf32, #tpu.memory_space<vmem>>, vector<16x256xf32>
    %1 = arith.truncf %0 : vector<16x256xf32> to vector<16x256xbf16>
    %c0_1 = arith.constant 0 : index
    %c0_2 = arith.constant 0 : index
    %2 = vector.load %arg2[%c0_1, %c0_2] : memref<256x512xbf16, #tpu.memory_space<vmem>>, vector<256x512xbf16>
    %cst = arith.constant dense<0.000000e+00> : vector<16x512xf32>
    %3 = tpu.matmul %1, %2, %cst {dimension_numbers = #tpu.dot_dimension_numbers<[1], [0], [0], [1], [0, 0, 1, 1], [], []>} : vector<16x256xbf16>, vector<256x512xbf16>, vector<16x512xf32> -> vector<16x512xf32>
    %c0_3 = arith.constant 0 : index
    %c0_4 = arith.constant 0 : index
    %4 = vector.load %arg3[%c0_3, %c0_4] : memref<1x512xf32, #tpu.memory_space<vmem>>, vector<1x512xf32>
    %5 = vector.broadcast %4 : vector<1x512xf32> to vector<16x512xf32>
    %6 = arith.addf %3, %5 : vector<16x512xf32>
    %cst_5 = arith.constant 0.000000e+00 : f32
    %7 = vector.broadcast %cst_5 : f32 to vector<16x512xf32>
    %8 = arith.maximumf %6, %7 : vector<16x512xf32>
    %9 = arith.truncf %8 : vector<16x512xf32> to vector<16x512xbf16>
    %c0_6 = arith.constant 0 : index
    %c0_7 = arith.constant 0 : index
    %10 = vector.load %arg4[%c0_6, %c0_7] : memref<512x128xbf16, #tpu.memory_space<vmem>>, vector<512x128xbf16>
    %cst_8 = arith.constant dense<0.000000e+00> : vector<16x128xf32>
    %11 = tpu.matmul %9, %10, %cst_8 {dimension_numbers = #tpu.dot_dimension_numbers<[1], [0], [0], [1], [0, 0, 1, 1], [], []>} : vector<16x512xbf16>, vector<512x128xbf16>, vector<16x128xf32> -> vector<16x128xf32>
    %c0_9 = arith.constant 0 : index
    %c0_10 = arith.constant 0 : index
    %12 = vector.load %arg5[%c0_9, %c0_10] : memref<1x128xf32, #tpu.memory_space<vmem>>, vector<1x128xf32>
    %13 = vector.broadcast %12 : vector<1x128xf32> to vector<16x128xf32>
    %14 = arith.addf %11, %13 : vector<16x128xf32>
    %cst_11 = arith.constant 0.000000e+00 : f32
    %15 = vector.broadcast %cst_11 : f32 to vector<16x128xf32>
    %16 = arith.maximumf %14, %15 : vector<16x128xf32>
    %17 = arith.truncf %16 : vector<16x128xf32> to vector<16x128xbf16>
    %c0_12 = arith.constant 0 : index
    %c0_13 = arith.constant 0 : index
    %18 = vector.load %arg6[%c0_12, %c0_13] : memref<128x128xbf16, #tpu.memory_space<vmem>>, vector<128x128xbf16>
    %cst_14 = arith.constant dense<0.000000e+00> : vector<16x128xf32>
    %19 = tpu.matmul %17, %18, %cst_14 {dimension_numbers = #tpu.dot_dimension_numbers<[1], [0], [0], [1], [0, 0, 1, 1], [], []>} : vector<16x128xbf16>, vector<128x128xbf16>, vector<16x128xf32> -> vector<16x128xf32>
    %c0_15 = arith.constant 0 : index
    %c0_16 = arith.constant 0 : index
    %20 = vector.load %arg7[%c0_15, %c0_16] : memref<1x128xf32, #tpu.memory_space<vmem>>, vector<1x128xf32>
    %21 = vector.broadcast %20 : vector<1x128xf32> to vector<16x128xf32>
    %22 = arith.addf %19, %21 : vector<16x128xf32>
    %23 = arith.truncf %22 : vector<16x128xf32> to vector<16x128xbf16>
    %c0_17 = arith.constant 0 : index
    %c0_18 = arith.constant 0 : index
    %24 = vector.load %arg8[%c0_17, %c0_18] : memref<16x128xbf16, #tpu.memory_space<vmem>>, vector<16x128xbf16>
    tpu.vector_store %arg8[%c0_17, %c0_18], %23 {strides = array<i32>} : memref<16x128xbf16, #tpu.memory_space<vmem>>, vector<16x128xbf16>,
    return
  }
  func.func @transform_0(%arg0: i32) -> (i32, i32) {
    %c0_i32 = arith.constant 0 : i32
    %c0_i32_0 = arith.constant 0 : i32
    return %arg0, %c0_i32 : i32, i32
  }
  func.func @transform_1(%arg0: i32) -> (i32, i32) {
    %c0_i32 = arith.constant 0 : i32
    %c0_i32_0 = arith.constant 0 : i32
    %c0_i32_1 = arith.constant 0 : i32
    return %c0_i32, %c0_i32_0 : i32, i32
  }
  func.func @transform_2(%arg0: i32) -> (i32, i32) {
    %c0_i32 = arith.constant 0 : i32
    %c0_i32_0 = arith.constant 0 : i32
    %c0_i32_1 = arith.constant 0 : i32
    return %c0_i32, %c0_i32_0 : i32, i32
  }
  func.func @transform_3(%arg0: i32) -> (i32, i32) {
    %c0_i32 = arith.constant 0 : i32
    %c0_i32_0 = arith.constant 0 : i32
    %c0_i32_1 = arith.constant 0 : i32
    return %c0_i32, %c0_i32_0 : i32, i32
  }
  func.func @transform_4(%arg0: i32) -> (i32, i32) {
    %c0_i32 = arith.constant 0 : i32
    %c0_i32_0 = arith.constant 0 : i32
    %c0_i32_1 = arith.constant 0 : i32
    return %c0_i32, %c0_i32_0 : i32, i32
  }
  func.func @transform_5(%arg0: i32) -> (i32, i32) {
    %c0_i32 = arith.constant 0 : i32
    %c0_i32_0 = arith.constant 0 : i32
    %c0_i32_1 = arith.constant 0 : i32
    return %c0_i32, %c0_i32_0 : i32, i32
  }
  func.func @transform_6(%arg0: i32) -> (i32, i32) {
    %c0_i32 = arith.constant 0 : i32
    %c0_i32_0 = arith.constant 0 : i32
    %c0_i32_1 = arith.constant 0 : i32
    return %c0_i32, %c0_i32_0 : i32, i32
  }
  func.func @transform_7(%arg0: i32) -> (i32, i32) {
    %c0_i32 = arith.constant 0 : i32
    %c0_i32_0 = arith.constant 0 : i32
    return %arg0, %c0_i32 : i32, i32
  }
}

</mosaic_0001>

<llo_original>
// kernel: tpu_custom_call.1
$region0: #{tpu_custom_call.1}
  #allocation0 [shape = 'u32[]', space=smem, size = 0x4, offset = 0x4, fixed_abs, tag = 'smem constant byte address 0x4 - core index']
  #allocation1 [shape = 'u32[72,128]{1,0:T(1,128)}', space=vmem, size = 0x9000, scoped, tag = 'internal scratch']
  %s0 = inlined_call_operand.hbm [shape: f32[32,256], index: 0, kind: input, shape index: {}]
  %s1 = inlined_call_operand.hbm [shape: bf16[256,512], index: 1, kind: input, shape index: {}]
  %s2 = inlined_call_operand.hbm [shape: f32[1,512], index: 2, kind: input, shape index: {}]
  %s3 = inlined_call_operand.hbm [shape: bf16[512,128], index: 3, kind: input, shape index: {}]
  %s4 = inlined_call_operand.vmem [shape: f32[1,128], index: 4, kind: input, shape index: {}]
  %s5 = inlined_call_operand.hbm [shape: bf16[128,128], index: 5, kind: input, shape index: {}]
  %s6 = inlined_call_operand.vmem [shape: f32[1,128], index: 6, kind: input, shape index: {}]
  %s7 = inlined_call_operand.hbm [shape: bf16[32,128], index: 7, kind: output, shape index: {}]
  %s8 = sld [smem:[#allocation0]]
  $region81: #{tpu_custom_call.1} parent=0
    _
  %s10 = ssub.s32 1, %s8
  %s11 = scalar_select 0, %s10, %s8
  $region1: #{tpu_custom_call.1} parent=0
    #allocation2 [shape = 'u8[32768]{0}', space=vmem, size = 0x8000, scoped, tag = 'input window, operand 0']
    #allocation3 [shape = 's32[2]{0}', space=sflag, size = 0x8, scoped, tag = 'scoped memory for tpu_custom_call.1']
    #allocation4 [shape = 's32[2]{0}', space=sflag, size = 0x8, scoped, tag = 'scoped memory for tpu_custom_call.1']
    #allocation5 [shape = 'u8[262144]{0}', space=vmem, size = 0x40000, scoped, tag = 'input window, operand 1, single buffered']
    #allocation6 [shape = 's32[1]{0}', space=sflag, size = 0x4, scoped, tag = 'scoped memory for tpu_custom_call.1']
    #allocation7 [shape = 'u8[2048]{0}', space=vmem, size = 0x800, scoped, tag = 'input window, operand 2, single buffered']
    #allocation8 [shape = 'u8[131072]{0}', space=vmem, size = 0x20000, scoped, tag = 'input window, operand 3, single buffered']
    #allocation9 [shape = 's32[1]{0}', space=sflag, size = 0x4, scoped, tag = 'scoped memory for tpu_custom_call.1']
    #allocation10 [shape = 'u8[32768]{0}', space=vmem, size = 0x8000, scoped, tag = 'input window, operand 5, single buffered']
    #allocation11 [shape = 'u8[8192]{0}', space=vmem, size = 0x2000, scoped, tag = 'output window, operand 0']
    %12 = vsyncpa [#allocation3], 0
    %s13 = scalar_lea.sflag [#allocation3], 1
    %14 = vsyncpa %s13, 0
    %15 = vsyncpa [#allocation6], 0
    %16 = vsyncpa [#allocation9], 0
    %17 = vsyncpa [#allocation4], 0
    %s18 = scalar_lea.sflag [#allocation4], 1
    %19 = vsyncpa %s18, 0
    loop: start=0, step=1, limit=4
    $region2: #{tpu_custom_call.1} parent=1 // loop_pre_header
      _
    $region3: #{tpu_custom_call.1} parent=1 // loop_header
      %s21 = sphi 0, %s25
      %p22 = scmp.ge.s32.totalorder %s21, 4
      %s31 = sphi 0, %s33
      %s34 = sphi 0, %s31
      %s35 = sphi 0, %s34
      %s51 = sphi 0, %s35
      %s55 = sphi 0, %s55
      %s57 = sphi 0, %s55
      %s58 = sphi 0, %s57
      %s72 = sphi 0, %s58
      %s76 = sphi 0, %s76
      %s78 = sphi 0, %s76
      %s79 = sphi 0, %s78
      %s93 = sphi 0, %s79
      %s97 = sphi 0, %s97
      %s99 = sphi 0, %s97
      %s100 = sphi 0, %s99
      %s114 = sphi 0, %s100
      %s118 = sphi 0, %s118
      %s120 = sphi 0, %s118
      %s121 = sphi 0, %s120
      %s135 = sphi 0, %s121
      %s139 = sphi 0, %s139
      %s141 = sphi 0, %s139
      %s142 = sphi 0, %s141
      %s156 = sphi 0, %s142
      %s160 = sphi 0, %s160
      %s162 = sphi 0, %s160
      %s163 = sphi 0, %s162
      %s177 = sphi 0, %s163
      %s183 = sphi 0, %s185
      %s186 = sphi 0, %s183
      %s187 = sphi 0, %s186
      %s203 = sphi 0, %s187
    $region4: #{tpu_custom_call.1} parent=1 // loop_header_branch
      %24 = sbr.rel (%p22) target = $region8
    $region5: #{tpu_custom_call.1} parent=1 // loop_body
      %s26 = ssub.s32 %s21, 1
      %s27 = ssub.s32 %s21, 2
      %s28 = sadd.s32 %s21, 1
      %s29 = ssub.s32 %s21, %s28
      %p30 = scmp.eq.s32.totalorder %s29, 0
      %s32 = sadd.s32 %s31, 1
      %s33 = scalar_select %p30, %s31, %s32
      %p36 = pneg %p30
      %p37 = scmp.eq.s32.totalorder %s21, 1
      %p38 = por %p36, %p37
      %p39 = scmp.ne.s32.totalorder %s31, %s34
      %p40 = scmp.eq.s32.totalorder %s21, 0
      %p41 = por %p39, %p40
      %p42 = scmp.ne.s32.totalorder %s31, %s34
      %p43 = scmp.eq.s32.totalorder %s26, 1
      %p44 = por %p42, %p43
      %p45 = scmp.ne.s32.totalorder %s34, %s35
      %p46 = scmp.eq.s32.totalorder %s26, 0
      %p47 = por %p45, %p46
      %p48 = scmp.ne.s32.totalorder %s34, %s35
      %p49 = scmp.eq.s32.totalorder %s27, 1
      %p50 = por %p48, %p49
      %p52 = scmp.ne.s32.totalorder %s35, %s51
      %p53 = scmp.eq.s32.totalorder %s27, 0
      %p54 = por %p52, %p53
      %s56 = sadd.s32 %s55, 1
      %p59 = scmp.eq.s32.totalorder %s21, 1
      %p60 = scmp.ne.s32.totalorder %s55, %s57
      %p61 = scmp.eq.s32.totalorder %s21, 0
      %p62 = por %p60, %p61
      %p63 = scmp.ne.s32.totalorder %s55, %s57
      %p64 = scmp.eq.s32.totalorder %s26, 1
      %p65 = por %p63, %p64
      %p66 = scmp.ne.s32.totalorder %s57, %s58
      %p67 = scmp.eq.s32.totalorder %s26, 0
      %p68 = por %p66, %p67
      %p69 = scmp.ne.s32.totalorder %s57, %s58
      %p70 = scmp.eq.s32.totalorder %s27, 1
      %p71 = por %p69, %p70
      %p73 = scmp.ne.s32.totalorder %s58, %s72
      %p74 = scmp.eq.s32.totalorder %s27, 0
      %p75 = por %p73, %p74
      %s77 = sadd.s32 %s76, 1
      %p80 = scmp.eq.s32.totalorder %s21, 1
      %p81 = scmp.ne.s32.totalorder %s76, %s78
      %p82 = scmp.eq.s32.totalorder %s21, 0
      %p83 = por %p81, %p82
      %p84 = scmp.ne.s32.totalorder %s76, %s78
      %p85 = scmp.eq.s32.totalorder %s26, 1
      %p86 = por %p84, %p85
      %p87 = scmp.ne.s32.totalorder %s78, %s79
      %p88 = scmp.eq.s32.totalorder %s26, 0
      %p89 = por %p87, %p88
      %p90 = scmp.ne.s32.totalorder %s78, %s79
      %p91 = scmp.eq.s32.totalorder %s27, 1
      %p92 = por %p90, %p91
      %p94 = scmp.ne.s32.totalorder %s79, %s93
      %p95 = scmp.eq.s32.totalorder %s27, 0
      %p96 = por %p94, %p95
      %s98 = sadd.s32 %s97, 1
      %p101 = scmp.eq.s32.totalorder %s21, 1
      %p102 = scmp.ne.s32.totalorder %s97, %s99
      %p103 = scmp.eq.s32.totalorder %s21, 0
      %p104 = por %p102, %p103
      %p105 = scmp.ne.s32.totalorder %s97, %s99
      %p106 = scmp.eq.s32.totalorder %s26, 1
      %p107 = por %p105, %p106
      %p108 = scmp.ne.s32.totalorder %s99, %s100
      %p109 = scmp.eq.s32.totalorder %s26, 0
      %p110 = por %p108, %p109
      %p111 = scmp.ne.s32.totalorder %s99, %s100
      %p112 = scmp.eq.s32.totalorder %s27, 1
      %p113 = por %p111, %p112
      %p115 = scmp.ne.s32.totalorder %s100, %s114
      %p116 = scmp.eq.s32.totalorder %s27, 0
      %p117 = por %p115, %p116
      %s119 = sadd.s32 %s118, 1
      %p122 = scmp.eq.s32.totalorder %s21, 1
      %p123 = scmp.ne.s32.totalorder %s118, %s120
      %p124 = scmp.eq.s32.totalorder %s21, 0
      %p125 = por %p123, %p124
      %p126 = scmp.ne.s32.totalorder %s118, %s120
      %p127 = scmp.eq.s32.totalorder %s26, 1
      %p128 = por %p126, %p127
      %p129 = scmp.ne.s32.totalorder %s120, %s121
      %p130 = scmp.eq.s32.totalorder %s26, 0
      %p131 = por %p129, %p130
      %p132 = scmp.ne.s32.totalorder %s120, %s121
      %p133 = scmp.eq.s32.totalorder %s27, 1
      %p134 = por %p132, %p133
      %p136 = scmp.ne.s32.totalorder %s121, %s135
      %p137 = scmp.eq.s32.totalorder %s27, 0
      %p138 = por %p136, %p137
      %s140 = sadd.s32 %s139, 1
      %p143 = scmp.eq.s32.totalorder %s21, 1
      %p144 = scmp.ne.s32.totalorder %s139, %s141
      %p145 = scmp.eq.s32.totalorder %s21, 0
      %p146 = por %p144, %p145
      %p147 = scmp.ne.s32.totalorder %s139, %s141
      %p148 = scmp.eq.s32.totalorder %s26, 1
      %p149 = por %p147, %p148
      %p150 = scmp.ne.s32.totalorder %s141, %s142
      %p151 = scmp.eq.s32.totalorder %s26, 0
      %p152 = por %p150, %p151
      %p153 = scmp.ne.s32.totalorder %s141, %s142
      %p154 = scmp.eq.s32.totalorder %s27, 1
      %p155 = por %p153, %p154
      %p157 = scmp.ne.s32.totalorder %s142, %s156
      %p158 = scmp.eq.s32.totalorder %s27, 0
      %p159 = por %p157, %p158
      %s161 = sadd.s32 %s160, 1
      %p164 = scmp.eq.s32.totalorder %s21, 1
      %p165 = scmp.ne.s32.totalorder %s160, %s162
      %p166 = scmp.eq.s32.totalorder %s21, 0
      %p167 = por %p165, %p166
      %p168 = scmp.ne.s32.totalorder %s160, %s162
      %p169 = scmp.eq.s32.totalorder %s26, 1
      %p170 = por %p168, %p169
      %p171 = scmp.ne.s32.totalorder %s162, %s163
      %p172 = scmp.eq.s32.totalorder %s26, 0
      %p173 = por %p171, %p172
      %p174 = scmp.ne.s32.totalorder %s162, %s163
      %p175 = scmp.eq.s32.totalorder %s27, 1
      %p176 = por %p174, %p175
      %p178 = scmp.ne.s32.totalorder %s163, %s177
      %p179 = scmp.eq.s32.totalorder %s27, 0
      %p180 = por %p178, %p179
      %s181 = ssub.s32 %s21, %s28
      %p182 = scmp.eq.s32.totalorder %s181, 0
      %s184 = sadd.s32 %s183, 1
      %s185 = scalar_select %p182, %s183, %s184
      %p188 = pneg %p182
      %p189 = scmp.eq.s32.totalorder %s21, 1
      %p190 = por %p188, %p189
      %p191 = scmp.ne.s32.totalorder %s183, %s186
      %p192 = scmp.eq.s32.totalorder %s21, 0
      %p193 = por %p191, %p192
      %p194 = scmp.ne.s32.totalorder %s183, %s186
      %p195 = scmp.eq.s32.totalorder %s26, 1
      %p196 = por %p194, %p195
      %p197 = scmp.ne.s32.totalorder %s186, %s187
      %p198 = scmp.eq.s32.totalorder %s26, 0
      %p199 = por %p197, %p198
      %p200 = scmp.ne.s32.totalorder %s186, %s187
      %p201 = scmp.eq.s32.totalorder %s27, 1
      %p202 = por %p200, %p201
      %p204 = scmp.ne.s32.totalorder %s187, %s203
      %p205 = scmp.eq.s32.totalorder %s27, 0
      %p206 = por %p204, %p205
      %p207 = scmp.le.s32.totalorder 1, %s21
      %p208 = scmp.lt.s32.totalorder %s21, 3
      %p209 = pnand %p207, %p208
      %p210 = pneg %p209
      // Predicated region
      $region9: #{tpu_custom_call.1} parent=5 // pred_check
        _
      $region10: #{tpu_custom_call.1} parent=5 // pred_check_branch
        %212 = sbr.rel (%p209) target = $region12
      $region11: #{tpu_custom_call.1} parent=5 // pred_region
        %s213 = ssub.s32 %s21, 1
        // Predicated region
        $region13: #{tpu_custom_call.1} parent=11 // pred_check
          %p214 = pneg %p68
        $region14: #{tpu_custom_call.1} parent=11 // pred_check_branch
          %216 = sbr.rel (%p214) target = $region16
        $region15: #{tpu_custom_call.1} parent=11 // pred_region
          %218 = vsyncadd [#allocation6], 0
          %s219 = sshll.u32 %s1, 4
          %s220 = int_to_ptr.hbm [resolvable:$true] %s219
          %s221 = sshll.u32 [#allocation5], 4
          %s222 = int_to_ptr.vmem [resolvable:$true] %s221
          %227 = dma.hbm_to_vmem [thread:$0]  %s220, 8192, %s222, [#allocation6], 256, 256, 16
        $region16: #{tpu_custom_call.1} parent=11 // pred_fallthru
          _
        // Predicated region
        $region17: #{tpu_custom_call.1} parent=11 // pred_check
          %p228 = pneg %p89
        $region18: #{tpu_custom_call.1} parent=11 // pred_check_branch
          %230 = sbr.rel (%p228) target = $region20
        $region19: #{tpu_custom_call.1} parent=11 // pred_region
          %232 = vsyncadd [#allocation6], 0
          %s234 = sshll.u32 %s2, 4
          %s235 = int_to_ptr.hbm [resolvable:$true] %s234
          %s236 = sshll.u32 [#allocation7], 4
          %s237 = int_to_ptr.vmem [resolvable:$true] %s236
          %239 = dma.hbm_to_vmem [thread:$0]  %s235, 64, %s237, [#allocation6]
        $region20: #{tpu_custom_call.1} parent=11 // pred_fallthru
          _
        // Predicated region
        $region21: #{tpu_custom_call.1} parent=11 // pred_check
          %p240 = pneg %p110
        $region22: #{tpu_custom_call.1} parent=11 // pred_check_branch
          %242 = sbr.rel (%p240) target = $region24
        $region23: #{tpu_custom_call.1} parent=11 // pred_region
          %244 = vsyncadd [#allocation9], 0
          %s245 = sshll.u32 %s3, 4
          %s246 = int_to_ptr.hbm [resolvable:$true] %s245
          %s247 = sshll.u32 [#allocation8], 4
          %s248 = int_to_ptr.vmem [resolvable:$true] %s247
          %253 = dma.hbm_to_vmem [thread:$0]  %s246, 4096, %s248, [#allocation9], 64, 64, 4
        $region24: #{tpu_custom_call.1} parent=11 // pred_fallthru
          _
        // Predicated region
        $region25: #{tpu_custom_call.1} parent=11 // pred_check
          %p254 = pneg %p131
        $region26: #{tpu_custom_call.1} parent=11 // pred_check_branch
          %256 = sbr.rel (%p254) target = $region28
        $region27: #{tpu_custom_call.1} parent=11 // pred_region
          _
        $region28: #{tpu_custom_call.1} parent=11 // pred_fallthru
          _
        // Predicated region
        $region29: #{tpu_custom_call.1} parent=11 // pred_check
          %p257 = pneg %p152
        $region30: #{tpu_custom_call.1} parent=11 // pred_check_branch
          %259 = sbr.rel (%p257) target = $region32
        $region31: #{tpu_custom_call.1} parent=11 // pred_region
          %261 = vsyncadd [#allocation9], 0
          %s262 = sshll.u32 %s5, 4
          %s263 = int_to_ptr.hbm [resolvable:$true] %s262
          %s264 = sshll.u32 [#allocation10], 4
          %s265 = int_to_ptr.vmem [resolvable:$true] %s264
          %270 = dma.hbm_to_vmem [thread:$0]  %s263, 1024, %s265, [#allocation9], 64, 64, 4
        $region32: #{tpu_custom_call.1} parent=11 // pred_fallthru
          _
        // Predicated region
        $region33: #{tpu_custom_call.1} parent=11 // pred_check
          %p271 = pneg %p173
        $region34: #{tpu_custom_call.1} parent=11 // pred_check_branch
          %273 = sbr.rel (%p271) target = $region36
        $region35: #{tpu_custom_call.1} parent=11 // pred_region
          _
        $region36: #{tpu_custom_call.1} parent=11 // pred_fallthru
          _
      $region12: #{tpu_custom_call.1} parent=5 // pred_fallthru
        _
      %p274 = scmp.lt.s32.totalorder %s21, 2
      // Predicated region
      $region37: #{tpu_custom_call.1} parent=5 // pred_check
        %p275 = pneg %p274
      $region38: #{tpu_custom_call.1} parent=5 // pred_check_branch
        %277 = sbr.rel (%p275) target = $region40
      $region39: #{tpu_custom_call.1} parent=5 // pred_region
        // Predicated region
        $region41: #{tpu_custom_call.1} parent=39 // pred_check
          %p278 = pneg %p41
        $region42: #{tpu_custom_call.1} parent=39 // pred_check_branch
          %280 = sbr.rel (%p278) target = $region44
        $region43: #{tpu_custom_call.1} parent=39 // pred_region
          %s281 = sand.u32 %s31, 1
          %s282 = scalar_lea.sflag [#allocation3], %s281
          %s283 = sand.u32 %s31, 1
          %s284 = smul.addr %s283, 32
          %s285 = scalar_lea.vmem [#allocation2], %s284
          %s286 = smul.u32 2, %s21
          %288 = vsyncadd %s282, 0
          %s289 = smul.addr %s286, 2
          %s290 = smul.addr %s289, 8
          %s291 = scalar_lea.hbm %s0, %s290
          %s292 = sshll.u32 %s291, 4
          %s293 = int_to_ptr.hbm [resolvable:$true] %s292
          %s294 = sshll.u32 %s285, 4
          %s295 = int_to_ptr.vmem [resolvable:$true] %s294
          %300 = dma.hbm_to_vmem [thread:$0]  %s293, 512, %s295, %s282, 256, 256, 16
        $region44: #{tpu_custom_call.1} parent=39 // pred_fallthru
          _
      $region40: #{tpu_custom_call.1} parent=5 // pred_fallthru
        _
      %p301 = scmp.le.s32.totalorder 1, %s21
      %p302 = scmp.lt.s32.totalorder %s21, 3
      %p303 = pnand %p301, %p302
      %p304 = pneg %p303
      // Predicated region
      $region45: #{tpu_custom_call.1} parent=5 // pred_check
        _
      $region46: #{tpu_custom_call.1} parent=5 // pred_check_branch
        %306 = sbr.rel (%p303) target = $region48
      $region47: #{tpu_custom_call.1} parent=5 // pred_region
        %s307 = ssub.s32 %s21, 1
        %s308 = sand.u32 %s34, 1
        %s309 = scalar_lea.sflag [#allocation3], %s308
        %s310 = sand.u32 %s34, 1
        %s311 = smul.addr %s310, 32
        %s312 = scalar_lea.vmem [#allocation2], %s311
        // Predicated region
        $region49: #{tpu_custom_call.1} parent=47 // pred_check
          %p313 = pneg %p47
        $region50: #{tpu_custom_call.1} parent=47 // pred_check_branch
          %315 = sbr.rel (%p313) target = $region52
        $region51: #{tpu_custom_call.1} parent=47 // pred_region
          %317 = dma.done %s309, 512
        $region52: #{tpu_custom_call.1} parent=47 // pred_fallthru
          _
        // Predicated region
        $region53: #{tpu_custom_call.1} parent=47 // pred_check
          %p318 = pneg %p68
        $region54: #{tpu_custom_call.1} parent=47 // pred_check_branch
          %320 = sbr.rel (%p318) target = $region56
        $region55: #{tpu_custom_call.1} parent=47 // pred_region
          %322 = dma.done [#allocation6], 8192
        $region56: #{tpu_custom_call.1} parent=47 // pred_fallthru
          _
        // Predicated region
        $region57: #{tpu_custom_call.1} parent=47 // pred_check
          %p323 = pneg %p89
        $region58: #{tpu_custom_call.1} parent=47 // pred_check_branch
          %325 = sbr.rel (%p323) target = $region60
        $region59: #{tpu_custom_call.1} parent=47 // pred_region
          %327 = dma.done [#allocation6], 64
        $region60: #{tpu_custom_call.1} parent=47 // pred_fallthru
          _
        // Predicated region
        $region61: #{tpu_custom_call.1} parent=47 // pred_check
          %p328 = pneg %p110
        $region62: #{tpu_custom_call.1} parent=47 // pred_check_branch
          %330 = sbr.rel (%p328) target = $region64
        $region63: #{tpu_custom_call.1} parent=47 // pred_region
          %332 = dma.done [#allocation9], 4096
        $region64: #{tpu_custom_call.1} parent=47 // pred_fallthru
          _
        // Predicated region
        $region65: #{tpu_custom_call.1} parent=47 // pred_check
          %p333 = pneg %p152
        $region66: #{tpu_custom_call.1} parent=47 // pred_check_branch
          %335 = sbr.rel (%p333) target = $region68
        $region67: #{tpu_custom_call.1} parent=47 // pred_region
          %337 = dma.done [#allocation9], 1024
        $region68: #{tpu_custom_call.1} parent=47 // pred_fallthru
          _
        %s338 = sand.u32 %s34, 1
        %s339 = scalar_lea.sflag [#allocation3], %s338
        %s340 = sand.u32 %s34, 1
        %s341 = smul.addr %s340, 32
        %s342 = scalar_lea.vmem [#allocation2], %s341
        %p343 = pneg %p47
        %p344 = pneg %p44
        %p345 = pneg %p68
        %p346 = pneg %p65
        %p347 = pneg %p89
        %p348 = pneg %p86
        %p349 = pneg %p110
        %p350 = pneg %p107
        %p351 = pneg %p131
        %p352 = pneg %p128
        %p353 = pneg %p152
        %p354 = pneg %p149
        %p355 = pneg %p173
        %p356 = pneg %p170
        %p357 = pneg %p199
        %p358 = pneg %p196
        %s359 = sand.u32 %s186, 1
        %s360 = scalar_lea.sflag [#allocation4], %s359
        %s361 = sand.u32 %s186, 1
        %s362 = smul.addr %s361, 8
        %s363 = scalar_lea.vmem [#allocation11], %s362
        %s364 = smul.u32 2, %s26
        %s365 = smul.u32 2, %s26
        %v366 = vld [vmem:[%s312] sm:$0xff]
        %v367 = vld [vmem:[%s312 + $0x8] sm:$0xff]
        %v368 = vld [vmem:[%s312 + $0x10] sm:$0xff]
        %v369 = vld [vmem:[%s312 + $0x18] sm:$0xff]
        %v370 = vpack.c.bf16 %v368, %v366
        %v371 = vpack.c.bf16 %v369, %v367
        %v372 = vld [vmem:[#allocation5] sm:$0xff]
        %v373 = vld [vmem:[#allocation5 + $0x8] sm:$0xff]
        %v374 = vld [vmem:[#allocation5 + $0x10] sm:$0xff]
        %v375 = vld [vmem:[#allocation5 + $0x18] sm:$0xff]
        %v376 = vld [vmem:[#allocation5 + $0x20] sm:$0xff]
        %v377 = vld [vmem:[#allocation5 + $0x28] sm:$0xff]
        %v378 = vld [vmem:[#allocation5 + $0x30] sm:$0xff]
        %v379 = vld [vmem:[#allocation5 + $0x38] sm:$0xff]
        %v380 = vld [vmem:[#allocation5 + $0x40] sm:$0xff]
        %v381 = vld [vmem:[#allocation5 + $0x48] sm:$0xff]
        %v382 = vld [vmem:[#allocation5 + $0x50] sm:$0xff]
        %v383 = vld [vmem:[#allocation5 + $0x58] sm:$0xff]
        %v384 = vld [vmem:[#allocation5 + $0x60] sm:$0xff]
        %v385 = vld [vmem:[#allocation5 + $0x68] sm:$0xff]
        %v386 = vld [vmem:[#allocation5 + $0x70] sm:$0xff]
        %v387 = vld [vmem:[#allocation5 + $0x78] sm:$0xff]
        %v388 = vld [vmem:[#allocation5 + $0x80] sm:$0xff]
        %v389 = vld [vmem:[#allocation5 + $0x88] sm:$0xff]
        %v390 = vld [vmem:[#allocation5 + $0x90] sm:$0xff]
        %v391 = vld [vmem:[#allocation5 + $0x98] sm:$0xff]
        %v392 = vld [vmem:[#allocation5 + $0xa0] sm:$0xff]
        %v393 = vld [vmem:[#allocation5 + $0xa8] sm:$0xff]
        %v394 = vld [vmem:[#allocation5 + $0xb0] sm:$0xff]
        %v395 = vld [vmem:[#allocation5 + $0xb8] sm:$0xff]
        %v396 = vld [vmem:[#allocation5 + $0xc0] sm:$0xff]
        %v397 = vld [vmem:[#allocation5 + $0xc8] sm:$0xff]
        %v398 = vld [vmem:[#allocation5 + $0xd0] sm:$0xff]
        %v399 = vld [vmem:[#allocation5 + $0xd8] sm:$0xff]
        %v400 = vld [vmem:[#allocation5 + $0xe0] sm:$0xff]
        %v401 = vld [vmem:[#allocation5 + $0xe8] sm:$0xff]
        %v402 = vld [vmem:[#allocation5 + $0xf0] sm:$0xff]
        %v403 = vld [vmem:[#allocation5 + $0xf8] sm:$0xff]
        %v404 = vld [vmem:[#allocation5 + $0x100] sm:$0xff]
        %v405 = vld [vmem:[#allocation5 + $0x108] sm:$0xff]
        %v406 = vld [vmem:[#allocation5 + $0x110] sm:$0xff]
        %v407 = vld [vmem:[#allocation5 + $0x118] sm:$0xff]
        %v408 = vld [vmem:[#allocation5 + $0x120] sm:$0xff]
        %v409 = vld [vmem:[#allocation5 + $0x128] sm:$0xff]
        %v410 = vld [vmem:[#allocation5 + $0x130] sm:$0xff]
        %v411 = vld [vmem:[#allocation5 + $0x138] sm:$0xff]
        %v412 = vld [vmem:[#allocation5 + $0x140] sm:$0xff]
        %v413 = vld [vmem:[#allocation5 + $0x148] sm:$0xff]
        %v414 = vld [vmem:[#allocation5 + $0x150] sm:$0xff]
        %v415 = vld [vmem:[#allocation5 + $0x158] sm:$0xff]
        %v416 = vld [vmem:[#allocation5 + $0x160] sm:$0xff]
        %v417 = vld [vmem:[#allocation5 + $0x168] sm:$0xff]
        %v418 = vld [vmem:[#allocation5 + $0x170] sm:$0xff]
        %v419 = vld [vmem:[#allocation5 + $0x178] sm:$0xff]
        %v420 = vld [vmem:[#allocation5 + $0x180] sm:$0xff]
        %v421 = vld [vmem:[#allocation5 + $0x188] sm:$0xff]
        %v422 = vld [vmem:[#allocation5 + $0x190] sm:$0xff]
        %v423 = vld [vmem:[#allocation5 + $0x198] sm:$0xff]
        %v424 = vld [vmem:[#allocation5 + $0x1a0] sm:$0xff]
        %v425 = vld [vmem:[#allocation5 + $0x1a8] sm:$0xff]
        %v426 = vld [vmem:[#allocation5 + $0x1b0] sm:$0xff]
        %v427 = vld [vmem:[#allocation5 + $0x1b8] sm:$0xff]
        %v428 = vld [vmem:[#allocation5 + $0x1c0] sm:$0xff]
        %v429 = vld [vmem:[#allocation5 + $0x1c8] sm:$0xff]
        %v430 = vld [vmem:[#allocation5 + $0x1d0] sm:$0xff]
        %v431 = vld [vmem:[#allocation5 + $0x1d8] sm:$0xff]
        %v432 = vld [vmem:[#allocation5 + $0x1e0] sm:$0xff]
        %v433 = vld [vmem:[#allocation5 + $0x1e8] sm:$0xff]
        %v434 = vld [vmem:[#allocation5 + $0x1f0] sm:$0xff]
        %v435 = vld [vmem:[#allocation5 + $0x1f8] sm:$0xff]
        %v436 = vld [vmem:[#allocation7] sm:$0xf]
        %v438 = vperm.slane %v436, 0
        %v439 = vperm.slane %v436, 1
        %v440 = vperm.slane %v436, 2
        %v441 = vperm.slane %v436, 3
        %v510 = vunpack.c.l.b16 %v372
        %v511 = vunpack.c.h.b16 %v372
        %v512 = vunpack.c.l.b16 %v373
        %v513 = vunpack.c.h.b16 %v373
        %v514 = vunpack.c.l.b16 %v374
        %v515 = vunpack.c.h.b16 %v374
        %v516 = vunpack.c.l.b16 %v375
        %v517 = vunpack.c.h.b16 %v375
        %v518 = vunpack.c.l.b16 %v376
        %v519 = vunpack.c.h.b16 %v376
        %v520 = vunpack.c.l.b16 %v377
        %v521 = vunpack.c.h.b16 %v377
        %v522 = vunpack.c.l.b16 %v378
        %v523 = vunpack.c.h.b16 %v378
        %v524 = vunpack.c.l.b16 %v379
        %v525 = vunpack.c.h.b16 %v379
        %v526 = vunpack.c.l.b16 %v380
        %v527 = vunpack.c.h.b16 %v380
        %v528 = vunpack.c.l.b16 %v381
        %v529 = vunpack.c.h.b16 %v381
        %v530 = vunpack.c.l.b16 %v382
        %v531 = vunpack.c.h.b16 %v382
        %v532 = vunpack.c.l.b16 %v383
        %v533 = vunpack.c.h.b16 %v383
        %v534 = vunpack.c.l.b16 %v384
        %v535 = vunpack.c.h.b16 %v384
        %v536 = vunpack.c.l.b16 %v385
        %v537 = vunpack.c.h.b16 %v385
        %v538 = vunpack.c.l.b16 %v386
        %v539 = vunpack.c.h.b16 %v386
        %v540 = vunpack.c.l.b16 %v387
        %v541 = vunpack.c.h.b16 %v387
        %v542 = vunpack.c.l.b16 %v388
        %v543 = vunpack.c.h.b16 %v388
        %v544 = vunpack.c.l.b16 %v389
        %v545 = vunpack.c.h.b16 %v389
        %v546 = vunpack.c.l.b16 %v390
        %v547 = vunpack.c.h.b16 %v390
        %v548 = vunpack.c.l.b16 %v391
        %v549 = vunpack.c.h.b16 %v391
        %v550 = vunpack.c.l.b16 %v392
        %v551 = vunpack.c.h.b16 %v392
        %v552 = vunpack.c.l.b16 %v393
        %v553 = vunpack.c.h.b16 %v393
        %v554 = vunpack.c.l.b16 %v394
        %v555 = vunpack.c.h.b16 %v394
        %v556 = vunpack.c.l.b16 %v395
        %v557 = vunpack.c.h.b16 %v395
        %v558 = vunpack.c.l.b16 %v396
        %v559 = vunpack.c.h.b16 %v396
        %v560 = vunpack.c.l.b16 %v397
        %v561 = vunpack.c.h.b16 %v397
        %v562 = vunpack.c.l.b16 %v398
        %v563 = vunpack.c.h.b16 %v398
        %v564 = vunpack.c.l.b16 %v399
        %v565 = vunpack.c.h.b16 %v399
        %v566 = vunpack.c.l.b16 %v400
        %v567 = vunpack.c.h.b16 %v400
        %v568 = vunpack.c.l.b16 %v401
        %v569 = vunpack.c.h.b16 %v401
        %v570 = vunpack.c.l.b16 %v402
        %v571 = vunpack.c.h.b16 %v402
        %v572 = vunpack.c.l.b16 %v403
        %v573 = vunpack.c.h.b16 %v403
        %v574 = vunpack.c.l.b16 %v404
        %v575 = vunpack.c.h.b16 %v404
        %v576 = vunpack.c.l.b16 %v405
        %v577 = vunpack.c.h.b16 %v405
        %v578 = vunpack.c.l.b16 %v406
        %v579 = vunpack.c.h.b16 %v406
        %v580 = vunpack.c.l.b16 %v407
        %v581 = vunpack.c.h.b16 %v407
        %v582 = vunpack.c.l.b16 %v408
        %v583 = vunpack.c.h.b16 %v408
        %v584 = vunpack.c.l.b16 %v409
        %v585 = vunpack.c.h.b16 %v409
        %v586 = vunpack.c.l.b16 %v410
        %v587 = vunpack.c.h.b16 %v410
        %v588 = vunpack.c.l.b16 %v411
        %v589 = vunpack.c.h.b16 %v411
        %v590 = vunpack.c.l.b16 %v412
        %v591 = vunpack.c.h.b16 %v412
        %v592 = vunpack.c.l.b16 %v413
        %v593 = vunpack.c.h.b16 %v413
        %v594 = vunpack.c.l.b16 %v414
        %v595 = vunpack.c.h.b16 %v414
        %v596 = vunpack.c.l.b16 %v415
        %v597 = vunpack.c.h.b16 %v415
        %v598 = vunpack.c.l.b16 %v416
        %v599 = vunpack.c.h.b16 %v416
        %v600 = vunpack.c.l.b16 %v417
        %v601 = vunpack.c.h.b16 %v417
        %v602 = vunpack.c.l.b16 %v418
        %v603 = vunpack.c.h.b16 %v418
        %v604 = vunpack.c.l.b16 %v419
        %v605 = vunpack.c.h.b16 %v419
        %v606 = vunpack.c.l.b16 %v420
        %v607 = vunpack.c.h.b16 %v420
        %v608 = vunpack.c.l.b16 %v421
        %v609 = vunpack.c.h.b16 %v421
        %v610 = vunpack.c.l.b16 %v422
        %v611 = vunpack.c.h.b16 %v422
        %v612 = vunpack.c.l.b16 %v423
        %v613 = vunpack.c.h.b16 %v423
        %v614 = vunpack.c.l.b16 %v424
        %v615 = vunpack.c.h.b16 %v424
        %v616 = vunpack.c.l.b16 %v425
        %v617 = vunpack.c.h.b16 %v425
        %v618 = vunpack.c.l.b16 %v426
        %v619 = vunpack.c.h.b16 %v426
        %v620 = vunpack.c.l.b16 %v427
        %v621 = vunpack.c.h.b16 %v427
        %v622 = vunpack.c.l.b16 %v428
        %v623 = vunpack.c.h.b16 %v428
        %v624 = vunpack.c.l.b16 %v429
        %v625 = vunpack.c.h.b16 %v429
        %v626 = vunpack.c.l.b16 %v430
        %v627 = vunpack.c.h.b16 %v430
        %v628 = vunpack.c.l.b16 %v431
        %v629 = vunpack.c.h.b16 %v431
        %v630 = vunpack.c.l.b16 %v432
        %v631 = vunpack.c.h.b16 %v432
        %v632 = vunpack.c.l.b16 %v433
        %v633 = vunpack.c.h.b16 %v433
        %v634 = vunpack.c.l.b16 %v434
        %v635 = vunpack.c.h.b16 %v434
        %v636 = vunpack.c.l.b16 %v435
        %v637 = vunpack.c.h.b16 %v435
        %v638 = vpack.c.b16 %v514, %v510
        %v639 = vpack.c.b16 %v515, %v511
        %v640 = vpack.c.b16 %v516, %v512
        %v641 = vpack.c.b16 %v517, %v513
        %v642 = vpack.c.b16 %v522, %v518
        %v643 = vpack.c.b16 %v523, %v519
        %v644 = vpack.c.b16 %v524, %v520
        %v645 = vpack.c.b16 %v525, %v521
        %v646 = vpack.c.b16 %v530, %v526
        %v647 = vpack.c.b16 %v531, %v527
        %v648 = vpack.c.b16 %v532, %v528
        %v649 = vpack.c.b16 %v533, %v529
        %v650 = vpack.c.b16 %v538, %v534
        %v651 = vpack.c.b16 %v539, %v535
        %v652 = vpack.c.b16 %v540, %v536
        %v653 = vpack.c.b16 %v541, %v537
        %v654 = vpack.c.b16 %v546, %v542
        %v655 = vpack.c.b16 %v547, %v543
        %v656 = vpack.c.b16 %v548, %v544
        %v657 = vpack.c.b16 %v549, %v545
        %v658 = vpack.c.b16 %v554, %v550
        %v659 = vpack.c.b16 %v555, %v551
        %v660 = vpack.c.b16 %v556, %v552
        %v661 = vpack.c.b16 %v557, %v553
        %v662 = vpack.c.b16 %v562, %v558
        %v663 = vpack.c.b16 %v563, %v559
        %v664 = vpack.c.b16 %v564, %v560
        %v665 = vpack.c.b16 %v565, %v561
        %v666 = vpack.c.b16 %v570, %v566
        %v667 = vpack.c.b16 %v571, %v567
        %v668 = vpack.c.b16 %v572, %v568
        %v669 = vpack.c.b16 %v573, %v569
        %v670 = vpack.c.b16 %v578, %v574
        %v671 = vpack.c.b16 %v579, %v575
        %v672 = vpack.c.b16 %v580, %v576
        %v673 = vpack.c.b16 %v581, %v577
        %v674 = vpack.c.b16 %v586, %v582
        %v675 = vpack.c.b16 %v587, %v583
        %v676 = vpack.c.b16 %v588, %v584
        %v677 = vpack.c.b16 %v589, %v585
        %v678 = vpack.c.b16 %v594, %v590
        %v679 = vpack.c.b16 %v595, %v591
        %v680 = vpack.c.b16 %v596, %v592
        %v681 = vpack.c.b16 %v597, %v593
        %v682 = vpack.c.b16 %v602, %v598
        %v683 = vpack.c.b16 %v603, %v599
        %v684 = vpack.c.b16 %v604, %v600
        %v685 = vpack.c.b16 %v605, %v601
        %v686 = vpack.c.b16 %v610, %v606
        %v687 = vpack.c.b16 %v611, %v607
        %v688 = vpack.c.b16 %v612, %v608
        %v689 = vpack.c.b16 %v613, %v609
        %v690 = vpack.c.b16 %v618, %v614
        %v691 = vpack.c.b16 %v619, %v615
        %v692 = vpack.c.b16 %v620, %v616
        %v693 = vpack.c.b16 %v621, %v617
        %v694 = vpack.c.b16 %v626, %v622
        %v695 = vpack.c.b16 %v627, %v623
        %v696 = vpack.c.b16 %v628, %v624
        %v697 = vpack.c.b16 %v629, %v625
        %v698 = vpack.c.b16 %v634, %v630
        %v699 = vpack.c.b16 %v635, %v631
        %v700 = vpack.c.b16 %v636, %v632
        %v701 = vpack.c.b16 %v637, %v633
        %766 = vmatpush.bf16.msra.mxu0 %v666
        %767 = vmatpush.bf16.msra.mxu0 %v662
        %768 = vmatpush.bf16.msra.mxu0 %v658
        %769 = vmatpush.bf16.msra.mxu0 %v654
        %770 = vmatpush.bf16.msra.mxu0 %v650
        %771 = vmatpush.bf16.msra.mxu0 %v646
        %772 = vmatpush.bf16.msra.mxu0 %v642
        %773 = vmatpush.bf16.msra.mxu0 %v638
        %774 = vmatmul.bf16.gmra.mxu0 %v370
        %v775 = vpop.f32.mrf.mxu0
        %v776 = vadd.f32 %v438, %v775
        %v777 = vpop.f32.mrf.mxu0
        %v778 = vadd.f32 %v438, %v777
        %779 = vdwg.mxu0
        %780 = vmatpush.bf16.msra.mxu0 %v698
        %781 = vmatpush.bf16.msra.mxu0 %v694
        %782 = vmatpush.bf16.msra.mxu0 %v690
        %783 = vmatpush.bf16.msra.mxu0 %v686
        %784 = vmatpush.bf16.msra.mxu0 %v682
        %785 = vmatpush.bf16.msra.mxu0 %v678
        %786 = vmatpush.bf16.msra.mxu0 %v674
        %787 = vmatpush.bf16.msra.mxu0 %v670
        %788 = vmatmul.bf16.gmra.mxu0 %v371
        %v789 = vpop.f32.mrf.mxu0
        %v790 = vadd.f32 %v776, %v789
        %v791 = vpop.f32.mrf.mxu0
        %v792 = vadd.f32 %v778, %v791
        %793 = vdwg.mxu0
        %794 = vmatpush.bf16.msra.mxu0 %v667
        %795 = vmatpush.bf16.msra.mxu0 %v663
        %796 = vmatpush.bf16.msra.mxu0 %v659
        %797 = vmatpush.bf16.msra.mxu0 %v655
        %798 = vmatpush.bf16.msra.mxu0 %v651
        %799 = vmatpush.bf16.msra.mxu0 %v647
        %800 = vmatpush.bf16.msra.mxu0 %v643
        %801 = vmatpush.bf16.msra.mxu0 %v639
        %802 = vmatmul.bf16.gmra.mxu0 %v370
        %v803 = vpop.f32.mrf.mxu0
        %v804 = vadd.f32 %v439, %v803
        %v805 = vpop.f32.mrf.mxu0
        %v806 = vadd.f32 %v439, %v805
        %807 = vdwg.mxu0
        %808 = vmatpush.bf16.msra.mxu0 %v699
        %809 = vmatpush.bf16.msra.mxu0 %v695
        %810 = vmatpush.bf16.msra.mxu0 %v691
        %811 = vmatpush.bf16.msra.mxu0 %v687
        %812 = vmatpush.bf16.msra.mxu0 %v683
        %813 = vmatpush.bf16.msra.mxu0 %v679
        %814 = vmatpush.bf16.msra.mxu0 %v675
        %815 = vmatpush.bf16.msra.mxu0 %v671
        %816 = vmatmul.bf16.gmra.mxu0 %v371
        %v817 = vpop.f32.mrf.mxu0
        %v818 = vadd.f32 %v804, %v817
        %v819 = vpop.f32.mrf.mxu0
        %v820 = vadd.f32 %v806, %v819
        %821 = vdwg.mxu0
        %822 = vmatpush.bf16.msra.mxu0 %v668
        %823 = vmatpush.bf16.msra.mxu0 %v664
        %824 = vmatpush.bf16.msra.mxu0 %v660
        %825 = vmatpush.bf16.msra.mxu0 %v656
        %826 = vmatpush.bf16.msra.mxu0 %v652
        %827 = vmatpush.bf16.msra.mxu0 %v648
        %828 = vmatpush.bf16.msra.mxu0 %v644
        %829 = vmatpush.bf16.msra.mxu0 %v640
        %830 = vmatmul.bf16.gmra.mxu0 %v370
        %v831 = vpop.f32.mrf.mxu0
        %v832 = vadd.f32 %v440, %v831
        %v833 = vpop.f32.mrf.mxu0
        %v834 = vadd.f32 %v440, %v833
        %835 = vdwg.mxu0
        %836 = vmatpush.bf16.msra.mxu0 %v700
        %837 = vmatpush.bf16.msra.mxu0 %v696
        %838 = vmatpush.bf16.msra.mxu0 %v692
        %839 = vmatpush.bf16.msra.mxu0 %v688
        %840 = vmatpush.bf16.msra.mxu0 %v684
        %841 = vmatpush.bf16.msra.mxu0 %v680
        %842 = vmatpush.bf16.msra.mxu0 %v676
        %843 = vmatpush.bf16.msra.mxu0 %v672
        %844 = vmatmul.bf16.gmra.mxu0 %v371
        %v845 = vpop.f32.mrf.mxu0
        %v846 = vadd.f32 %v832, %v845
        %v847 = vpop.f32.mrf.mxu0
        %v848 = vadd.f32 %v834, %v847
        %849 = vdwg.mxu0
        %850 = vmatpush.bf16.msra.mxu0 %v669
        %851 = vmatpush.bf16.msra.mxu0 %v665
        %852 = vmatpush.bf16.msra.mxu0 %v661
        %853 = vmatpush.bf16.msra.mxu0 %v657
        %854 = vmatpush.bf16.msra.mxu0 %v653
        %855 = vmatpush.bf16.msra.mxu0 %v649
        %856 = vmatpush.bf16.msra.mxu0 %v645
        %857 = vmatpush.bf16.msra.mxu0 %v641
        %858 = vmatmul.bf16.gmra.mxu0 %v370
        %v859 = vpop.f32.mrf.mxu0
        %v860 = vadd.f32 %v441, %v859
        %v861 = vpop.f32.mrf.mxu0
        %v862 = vadd.f32 %v441, %v861
        %863 = vdwg.mxu0
        %864 = vmatpush.bf16.msra.mxu0 %v701
        %865 = vmatpush.bf16.msra.mxu0 %v697
        %866 = vmatpush.bf16.msra.mxu0 %v693
        %867 = vmatpush.bf16.msra.mxu0 %v689
        %868 = vmatpush.bf16.msra.mxu0 %v685
        %869 = vmatpush.bf16.msra.mxu0 %v681
        %870 = vmatpush.bf16.msra.mxu0 %v677
        %871 = vmatpush.bf16.msra.mxu0 %v673
        %872 = vmatmul.bf16.gmra.mxu0 %v371
        %v873 = vpop.f32.mrf.mxu0
        %v874 = vadd.f32 %v860, %v873
        %v875 = vpop.f32.mrf.mxu0
        %v876 = vadd.f32 %v862, %v875
        %877 = vdwg.mxu0
        %v878 = vmax.f32 %v790, 0.0
        %v879 = vmax.f32 %v818, 0.0
        %v880 = vmax.f32 %v846, 0.0
        %v881 = vmax.f32 %v874, 0.0
        %v882 = vmax.f32 %v792, 0.0
        %v883 = vmax.f32 %v820, 0.0
        %v884 = vmax.f32 %v848, 0.0
        %v885 = vmax.f32 %v876, 0.0
        %v886 = vpack.c.bf16 %v882, %v878
        %v887 = vpack.c.bf16 %v883, %v879
        %v888 = vpack.c.bf16 %v884, %v880
        %v889 = vpack.c.bf16 %v885, %v881
        %v890 = vld [vmem:[#allocation8] sm:$0xf]
        %v891 = vld [vmem:[#allocation8 + $0x4] sm:$0xf]
        %v892 = vld [vmem:[#allocation8 + $0x8] sm:$0xf]
        %v893 = vld [vmem:[#allocation8 + $0xc] sm:$0xf]
        %v894 = vld [vmem:[#allocation8 + $0x10] sm:$0xf]
        %v895 = vld [vmem:[#allocation8 + $0x14] sm:$0xf]
        %v896 = vld [vmem:[#allocation8 + $0x18] sm:$0xf]
        %v897 = vld [vmem:[#allocation8 + $0x1c] sm:$0xf]
        %v898 = vld [vmem:[#allocation8 + $0x20] sm:$0xf]
        %v899 = vld [vmem:[#allocation8 + $0x24] sm:$0xf]
        %v900 = vld [vmem:[#allocation8 + $0x28] sm:$0xf]
        %v901 = vld [vmem:[#allocation8 + $0x2c] sm:$0xf]
        %v902 = vld [vmem:[#allocation8 + $0x30] sm:$0xf]
        %v903 = vld [vmem:[#allocation8 + $0x34] sm:$0xf]
        %v904 = vld [vmem:[#allocation8 + $0x38] sm:$0xf]
        %v905 = vld [vmem:[#allocation8 + $0x3c] sm:$0xf]
        %v906 = vld [vmem:[#allocation8 + $0x40] sm:$0xf]
        %v907 = vld [vmem:[#allocation8 + $0x44] sm:$0xf]
        %v908 = vld [vmem:[#allocation8 + $0x48] sm:$0xf]
        %v909 = vld [vmem:[#allocation8 + $0x4c] sm:$0xf]
        %v910 = vld [vmem:[#allocation8 + $0x50] sm:$0xf]
        %v911 = vld [vmem:[#allocation8 + $0x54] sm:$0xf]
        %v912 = vld [vmem:[#allocation8 + $0x58] sm:$0xf]
        %v913 = vld [vmem:[#allocation8 + $0x5c] sm:$0xf]
        %v914 = vld [vmem:[#allocation8 + $0x60] sm:$0xf]
        %v915 = vld [vmem:[#allocation8 + $0x64] sm:$0xf]
        %v916 = vld [vmem:[#allocation8 + $0x68] sm:$0xf]
        %v917 = vld [vmem:[#allocation8 + $0x6c] sm:$0xf]
        %v918 = vld [vmem:[#allocation8 + $0x70] sm:$0xf]
        %v919 = vld [vmem:[#allocation8 + $0x74] sm:$0xf]
        %v920 = vld [vmem:[#allocation8 + $0x78] sm:$0xf]
        %v921 = vld [vmem:[#allocation8 + $0x7c] sm:$0xf]
        %v922 = vld [vmem:[#allocation8 + $0x80] sm:$0xf]
        %v923 = vld [vmem:[#allocation8 + $0x84] sm:$0xf]
        %v924 = vld [vmem:[#allocation8 + $0x88] sm:$0xf]
        %v925 = vld [vmem:[#allocation8 + $0x8c] sm:$0xf]
        %v926 = vld [vmem:[#allocation8 + $0x90] sm:$0xf]
        %v927 = vld [vmem:[#allocation8 + $0x94] sm:$0xf]
        %v928 = vld [vmem:[#allocation8 + $0x98] sm:$0xf]
        %v929 = vld [vmem:[#allocation8 + $0x9c] sm:$0xf]
        %v930 = vld [vmem:[#allocation8 + $0xa0] sm:$0xf]
        %v931 = vld [vmem:[#allocation8 + $0xa4] sm:$0xf]
        %v932 = vld [vmem:[#allocation8 + $0xa8] sm:$0xf]
        %v933 = vld [vmem:[#allocation8 + $0xac] sm:$0xf]
        %v934 = vld [vmem:[#allocation8 + $0xb0] sm:$0xf]
        %v935 = vld [vmem:[#allocation8 + $0xb4] sm:$0xf]
        %v936 = vld [vmem:[#allocation8 + $0xb8] sm:$0xf]
        %v937 = vld [vmem:[#allocation8 + $0xbc] sm:$0xf]
        %v938 = vld [vmem:[#allocation8 + $0xc0] sm:$0xf]
        %v939 = vld [vmem:[#allocation8 + $0xc4] sm:$0xf]
        %v940 = vld [vmem:[#allocation8 + $0xc8] sm:$0xf]
        %v941 = vld [vmem:[#allocation8 + $0xcc] sm:$0xf]
        %v942 = vld [vmem:[#allocation8 + $0xd0] sm:$0xf]
        %v943 = vld [vmem:[#allocation8 + $0xd4] sm:$0xf]
        %v944 = vld [vmem:[#allocation8 + $0xd8] sm:$0xf]
        %v945 = vld [vmem:[#allocation8 + $0xdc] sm:$0xf]
        %v946 = vld [vmem:[#allocation8 + $0xe0] sm:$0xf]
        %v947 = vld [vmem:[#allocation8 + $0xe4] sm:$0xf]
        %v948 = vld [vmem:[#allocation8 + $0xe8] sm:$0xf]
        %v949 = vld [vmem:[#allocation8 + $0xec] sm:$0xf]
        %v950 = vld [vmem:[#allocation8 + $0xf0] sm:$0xf]
        %v951 = vld [vmem:[#allocation8 + $0xf4] sm:$0xf]
        %v952 = vld [vmem:[#allocation8 + $0xf8] sm:$0xf]
        %v953 = vld [vmem:[#allocation8 + $0xfc] sm:$0xf]
        %v954 = vld [vmem:[%s4] sm:$0x1]
        %v956 = vperm.slane %v954, 0
        %v1022 = vunpack.c.l.b16 %v890
        %v1023 = vunpack.c.l.b16 %v891
        %v1024 = vunpack.c.l.b16 %v892
        %v1025 = vunpack.c.l.b16 %v893
        %v1026 = vunpack.c.l.b16 %v894
        %v1027 = vunpack.c.l.b16 %v895
        %v1028 = vunpack.c.l.b16 %v896
        %v1029 = vunpack.c.l.b16 %v897
        %v1030 = vunpack.c.l.b16 %v898
        %v1031 = vunpack.c.l.b16 %v899
        %v1032 = vunpack.c.l.b16 %v900
        %v1033 = vunpack.c.l.b16 %v901
        %v1034 = vunpack.c.l.b16 %v902
        %v1035 = vunpack.c.l.b16 %v903
        %v1036 = vunpack.c.l.b16 %v904
        %v1037 = vunpack.c.l.b16 %v905
        %v1038 = vunpack.c.l.b16 %v906
        %v1039 = vunpack.c.l.b16 %v907
        %v1040 = vunpack.c.l.b16 %v908
        %v1041 = vunpack.c.l.b16 %v909
        %v1042 = vunpack.c.l.b16 %v910
        %v1043 = vunpack.c.l.b16 %v911
        %v1044 = vunpack.c.l.b16 %v912
        %v1045 = vunpack.c.l.b16 %v913
        %v1046 = vunpack.c.l.b16 %v914
        %v1047 = vunpack.c.l.b16 %v915
        %v1048 = vunpack.c.l.b16 %v916
        %v1049 = vunpack.c.l.b16 %v917
        %v1050 = vunpack.c.l.b16 %v918
        %v1051 = vunpack.c.l.b16 %v919
        %v1052 = vunpack.c.l.b16 %v920
        %v1053 = vunpack.c.l.b16 %v921
        %v1054 = vunpack.c.l.b16 %v922
        %v1055 = vunpack.c.l.b16 %v923
        %v1056 = vunpack.c.l.b16 %v924
        %v1057 = vunpack.c.l.b16 %v925
        %v1058 = vunpack.c.l.b16 %v926
        %v1059 = vunpack.c.l.b16 %v927
        %v1060 = vunpack.c.l.b16 %v928
        %v1061 = vunpack.c.l.b16 %v929
        %v1062 = vunpack.c.l.b16 %v930
        %v1063 = vunpack.c.l.b16 %v931
        %v1064 = vunpack.c.l.b16 %v932
        %v1065 = vunpack.c.l.b16 %v933
        %v1066 = vunpack.c.l.b16 %v934
        %v1067 = vunpack.c.l.b16 %v935
        %v1068 = vunpack.c.l.b16 %v936
        %v1069 = vunpack.c.l.b16 %v937
        %v1070 = vunpack.c.l.b16 %v938
        %v1071 = vunpack.c.l.b16 %v939
        %v1072 = vunpack.c.l.b16 %v940
        %v1073 = vunpack.c.l.b16 %v941
        %v1074 = vunpack.c.l.b16 %v942
        %v1075 = vunpack.c.l.b16 %v943
        %v1076 = vunpack.c.l.b16 %v944
        %v1077 = vunpack.c.l.b16 %v945
        %v1078 = vunpack.c.l.b16 %v946
        %v1079 = vunpack.c.l.b16 %v947
        %v1080 = vunpack.c.l.b16 %v948
        %v1081 = vunpack.c.l.b16 %v949
        %v1082 = vunpack.c.l.b16 %v950
        %v1083 = vunpack.c.l.b16 %v951
        %v1084 = vunpack.c.l.b16 %v952
        %v1085 = vunpack.c.l.b16 %v953
        %v1086 = vpack.c.b16 %v1023, %v1022
        %v1087 = vpack.c.b16 %v1025, %v1024
        %v1088 = vpack.c.b16 %v1027, %v1026
        %v1089 = vpack.c.b16 %v1029, %v1028
        %v1090 = vpack.c.b16 %v1031, %v1030
        %v1091 = vpack.c.b16 %v1033, %v1032
        %v1092 = vpack.c.b16 %v1035, %v1034
        %v1093 = vpack.c.b16 %v1037, %v1036
        %v1094 = vpack.c.b16 %v1039, %v1038
        %v1095 = vpack.c.b16 %v1041, %v1040
        %v1096 = vpack.c.b16 %v1043, %v1042
        %v1097 = vpack.c.b16 %v1045, %v1044
        %v1098 = vpack.c.b16 %v1047, %v1046
        %v1099 = vpack.c.b16 %v1049, %v1048
        %v1100 = vpack.c.b16 %v1051, %v1050
        %v1101 = vpack.c.b16 %v1053, %v1052
        %v1102 = vpack.c.b16 %v1055, %v1054
        %v1103 = vpack.c.b16 %v1057, %v1056
        %v1104 = vpack.c.b16 %v1059, %v1058
        %v1105 = vpack.c.b16 %v1061, %v1060
        %v1106 = vpack.c.b16 %v1063, %v1062
        %v1107 = vpack.c.b16 %v1065, %v1064
        %v1108 = vpack.c.b16 %v1067, %v1066
        %v1109 = vpack.c.b16 %v1069, %v1068
        %v1110 = vpack.c.b16 %v1071, %v1070
        %v1111 = vpack.c.b16 %v1073, %v1072
        %v1112 = vpack.c.b16 %v1075, %v1074
        %v1113 = vpack.c.b16 %v1077, %v1076
        %v1114 = vpack.c.b16 %v1079, %v1078
        %v1115 = vpack.c.b16 %v1081, %v1080
        %v1116 = vpack.c.b16 %v1083, %v1082
        %v1117 = vpack.c.b16 %v1085, %v1084
        %1150 = vmatpush.bf16.msra.mxu0 %v1093
        %1151 = vmatpush.bf16.msra.mxu0 %v1092
        %1152 = vmatpush.bf16.msra.mxu0 %v1091
        %1153 = vmatpush.bf16.msra.mxu0 %v1090
        %1154 = vmatpush.bf16.msra.mxu0 %v1089
        %1155 = vmatpush.bf16.msra.mxu0 %v1088
        %1156 = vmatpush.bf16.msra.mxu0 %v1087
        %1157 = vmatpush.bf16.msra.mxu0 %v1086
        %1158 = vmatmul.bf16.gmra.mxu0 %v886
        %v1159 = vpop.f32.mrf.mxu0
        %v1160 = vadd.f32 %v956, %v1159
        %v1161 = vpop.f32.mrf.mxu0
        %v1162 = vadd.f32 %v956, %v1161
        %1163 = vdwg.mxu0
        %1164 = vmatpush.bf16.msra.mxu0 %v1101
        %1165 = vmatpush.bf16.msra.mxu0 %v1100
        %1166 = vmatpush.bf16.msra.mxu0 %v1099
        %1167 = vmatpush.bf16.msra.mxu0 %v1098
        %1168 = vmatpush.bf16.msra.mxu0 %v1097
        %1169 = vmatpush.bf16.msra.mxu0 %v1096
        %1170 = vmatpush.bf16.msra.mxu0 %v1095
        %1171 = vmatpush.bf16.msra.mxu0 %v1094
        %1172 = vmatmul.bf16.gmra.mxu0 %v887
        %v1173 = vpop.f32.mrf.mxu0
        %v1174 = vadd.f32 %v1160, %v1173
        %v1175 = vpop.f32.mrf.mxu0
        %v1176 = vadd.f32 %v1162, %v1175
        %1177 = vdwg.mxu0
        %1178 = vmatpush.bf16.msra.mxu0 %v1109
        %1179 = vmatpush.bf16.msra.mxu0 %v1108
        %1180 = vmatpush.bf16.msra.mxu0 %v1107
        %1181 = vmatpush.bf16.msra.mxu0 %v1106
        %1182 = vmatpush.bf16.msra.mxu0 %v1105
        %1183 = vmatpush.bf16.msra.mxu0 %v1104
        %1184 = vmatpush.bf16.msra.mxu0 %v1103
        %1185 = vmatpush.bf16.msra.mxu0 %v1102
        %1186 = vmatmul.bf16.gmra.mxu0 %v888
        %v1187 = vpop.f32.mrf.mxu0
        %v1188 = vadd.f32 %v1174, %v1187
        %v1189 = vpop.f32.mrf.mxu0
        %v1190 = vadd.f32 %v1176, %v1189
        %1191 = vdwg.mxu0
        %1192 = vmatpush.bf16.msra.mxu0 %v1117
        %1193 = vmatpush.bf16.msra.mxu0 %v1116
        %1194 = vmatpush.bf16.msra.mxu0 %v1115
        %1195 = vmatpush.bf16.msra.mxu0 %v1114
        %1196 = vmatpush.bf16.msra.mxu0 %v1113
        %1197 = vmatpush.bf16.msra.mxu0 %v1112
        %1198 = vmatpush.bf16.msra.mxu0 %v1111
        %1199 = vmatpush.bf16.msra.mxu0 %v1110
        %1200 = vmatmul.bf16.gmra.mxu0 %v889
        %v1201 = vpop.f32.mrf.mxu0
        %v1202 = vadd.f32 %v1188, %v1201
        %v1203 = vpop.f32.mrf.mxu0
        %v1204 = vadd.f32 %v1190, %v1203
        %1205 = vdwg.mxu0
        %v1206 = vmax.f32 %v1202, 0.0
        %v1207 = vmax.f32 %v1204, 0.0
        %v1208 = vpack.c.bf16 %v1207, %v1206
        %v1209 = vld [vmem:[#allocation10] sm:$0xf]
        %v1210 = vld [vmem:[#allocation10 + $0x4] sm:$0xf]
        %v1211 = vld [vmem:[#allocation10 + $0x8] sm:$0xf]
        %v1212 = vld [vmem:[#allocation10 + $0xc] sm:$0xf]
        %v1213 = vld [vmem:[#allocation10 + $0x10] sm:$0xf]
        %v1214 = vld [vmem:[#allocation10 + $0x14] sm:$0xf]
        %v1215 = vld [vmem:[#allocation10 + $0x18] sm:$0xf]
        %v1216 = vld [vmem:[#allocation10 + $0x1c] sm:$0xf]
        %v1217 = vld [vmem:[#allocation10 + $0x20] sm:$0xf]
        %v1218 = vld [vmem:[#allocation10 + $0x24] sm:$0xf]
        %v1219 = vld [vmem:[#allocation10 + $0x28] sm:$0xf]
        %v1220 = vld [vmem:[#allocation10 + $0x2c] sm:$0xf]
        %v1221 = vld [vmem:[#allocation10 + $0x30] sm:$0xf]
        %v1222 = vld [vmem:[#allocation10 + $0x34] sm:$0xf]
        %v1223 = vld [vmem:[#allocation10 + $0x38] sm:$0xf]
        %v1224 = vld [vmem:[#allocation10 + $0x3c] sm:$0xf]
        %v1225 = vld [vmem:[%s6] sm:$0x1]
        %v1227 = vperm.slane %v1225, 0
        %v1245 = vunpack.c.l.b16 %v1209
        %v1246 = vunpack.c.l.b16 %v1210
        %v1247 = vunpack.c.l.b16 %v1211
        %v1248 = vunpack.c.l.b16 %v1212
        %v1249 = vunpack.c.l.b16 %v1213
        %v1250 = vunpack.c.l.b16 %v1214
        %v1251 = vunpack.c.l.b16 %v1215
        %v1252 = vunpack.c.l.b16 %v1216
        %v1253 = vunpack.c.l.b16 %v1217
        %v1254 = vunpack.c.l.b16 %v1218
        %v1255 = vunpack.c.l.b16 %v1219
        %v1256 = vunpack.c.l.b16 %v1220
        %v1257 = vunpack.c.l.b16 %v1221
        %v1258 = vunpack.c.l.b16 %v1222
        %v1259 = vunpack.c.l.b16 %v1223
        %v1260 = vunpack.c.l.b16 %v1224
        %v1261 = vpack.c.b16 %v1246, %v1245
        %v1262 = vpack.c.b16 %v1248, %v1247
        %v1263 = vpack.c.b16 %v1250, %v1249
        %v1264 = vpack.c.b16 %v1252, %v1251
        %v1265 = vpack.c.b16 %v1254, %v1253
        %v1266 = vpack.c.b16 %v1256, %v1255
        %v1267 = vpack.c.b16 %v1258, %v1257
        %v1268 = vpack.c.b16 %v1260, %v1259
        %1277 = vmatpush.bf16.msra.mxu0 %v1268
        %1278 = vmatpush.bf16.msra.mxu0 %v1267
        %1279 = vmatpush.bf16.msra.mxu0 %v1266
        %1280 = vmatpush.bf16.msra.mxu0 %v1265
        %1281 = vmatpush.bf16.msra.mxu0 %v1264
        %1282 = vmatpush.bf16.msra.mxu0 %v1263
        %1283 = vmatpush.bf16.msra.mxu0 %v1262
        %1284 = vmatpush.bf16.msra.mxu0 %v1261
        %1285 = vmatmul.bf16.gmra.mxu0 %v1208
        %v1286 = vpop.f32.mrf.mxu0
        %v1287 = vadd.f32 %v1227, %v1286
        %v1288 = vpop.f32.mrf.mxu0
        %v1289 = vadd.f32 %v1227, %v1288
        %1290 = vdwg.mxu0
        %v1291 = vpack.c.bf16 %v1287, %v1287
        %v1292 = vpack.c.bf16 %v1289, %v1289
        %1293 = vst [vmem:[%s363] sm:$0xf] %v1291
        %1294 = vst [vmem:[%s363 + $0x4] sm:$0xf] %v1292
        %s1295 = sand.u32 %s186, 1
        %s1296 = scalar_lea.sflag [#allocation4], %s1295
        %s1297 = sand.u32 %s186, 1
        %s1298 = smul.addr %s1297, 8
        %s1299 = scalar_lea.vmem [#allocation11], %s1298
        // Predicated region
        $region69: #{tpu_custom_call.1} parent=47 // pred_check
          %p1300 = pneg %p196
        $region70: #{tpu_custom_call.1} parent=47 // pred_check_branch
          %1302 = sbr.rel (%p1300) target = $region72
        $region71: #{tpu_custom_call.1} parent=47 // pred_region
          %s1303 = smul.u32 2, %s26
          %1305 = vsyncadd %s1296, 0
          %s1306 = smul.addr %s1303, 4
          %s1307 = scalar_lea.hbm %s7, %s1306
          %s1308 = sshll.u32 %s1299, 4
          %s1309 = int_to_ptr.vmem [resolvable:$true] %s1308
          %s1310 = sshll.u32 %s1307, 4
          %s1311 = int_to_ptr.hbm [resolvable:$true] %s1310
          %1316 = dma.vmem_to_hbm [thread:$0]  %s1309, 128, %s1311, %s1296, 64, 64, 4
        $region72: #{tpu_custom_call.1} parent=47 // pred_fallthru
          _
      $region48: #{tpu_custom_call.1} parent=5 // pred_fallthru
        _
      %p1317 = scmp.le.s32.totalorder 2, %s21
      // Predicated region
      $region73: #{tpu_custom_call.1} parent=5 // pred_check
        %p1318 = pneg %p1317
      $region74: #{tpu_custom_call.1} parent=5 // pred_check_branch
        %1320 = sbr.rel (%p1318) target = $region76
      $region75: #{tpu_custom_call.1} parent=5 // pred_region
        %s1321 = ssub.s32 %s21, 2
        // Predicated region
        $region77: #{tpu_custom_call.1} parent=75 // pred_check
          %p1322 = pneg %p202
        $region78: #{tpu_custom_call.1} parent=75 // pred_check_branch
          %1324 = sbr.rel (%p1322) target = $region80
        $region79: #{tpu_custom_call.1} parent=75 // pred_region
          %s1325 = sand.u32 %s187, 1
          %s1326 = scalar_lea.sflag [#allocation4], %s1325
          %s1327 = sand.u32 %s187, 1
          %s1328 = smul.addr %s1327, 8
          %s1329 = scalar_lea.vmem [#allocation11], %s1328
          %1331 = dma.done %s1326, 128
        $region80: #{tpu_custom_call.1} parent=75 // pred_fallthru
          _
      $region76: #{tpu_custom_call.1} parent=5 // pred_fallthru
        _
    $region6: #{tpu_custom_call.1} parent=1 // loop_footer
      %s25 = sadd.s32 1, %s21
    $region7: #{tpu_custom_call.1} parent=1 // loop_footer_branch
      %20 = sbr.rel target = $region3
    $region8: #{tpu_custom_call.1} parent=1 // loop_exit
      _
    %1332 = vsyncpa [#allocation3], 1
    %s1333 = scalar_lea.sflag [#allocation3], 1
    %1334 = vsyncpa %s1333, 1
    %1335 = vsyncpa [#allocation6], 1
    %1336 = vsyncpa [#allocation9], 1
    %1337 = vsyncpa [#allocation4], 1
    %s1338 = scalar_lea.sflag [#allocation4], 1
    %1339 = vsyncpa %s1338, 1

</llo_original>
